<compile_context>
chip_gen: v7x
topology: tpu7x:2x2x1
jax: 0.10.0
libtpu: 0.0.40
codegen_flags: <defaults>
</compile_context>

<pallas_src>
import functools

import jax
import jax.numpy as jnp
from jax.experimental import pallas as pl
from jax.experimental.pallas import tpu as pltpu

_SMOOTH = 1e-05
# Mask value for invalid lanes of the ragged last tile: with x = -1e30 and t = 0
# every per-element contribution (BCE term, sigmoid, intersection, target sum)
# is exactly 0 in f32, so masked lanes add nothing to the accumulators.
_NEG_PAD = -1e30

_BLOCK_BYTE_BUDGET = 4 * 1024 * 1024   # combined logits+target bytes per grid block
_MAX_BATCH_BLOCK = 256                 # batch-tile cap (multiple of 8)


def _bce_dice_kernel(x_ref, t_ref, bce_ref, inter_ref, sig_ref, tgt_ref, *,
                     tail_cols):
    k = pl.program_id(1)
    last_k = pl.num_programs(1) - 1

    @pl.when(k == 0)
    def _init():
        bce_ref[...] = jnp.zeros_like(bce_ref)
        inter_ref[...] = jnp.zeros_like(inter_ref)
        sig_ref[...] = jnp.zeros_like(sig_ref)
        tgt_ref[...] = jnp.zeros_like(tgt_ref)

    # Upcast in-kernel; inputs arrive in whatever dtype the caller stored them in.
    x = x_ref[...].astype(jnp.float32)       # (bn, tf) logits
    t = t_ref[...].astype(jnp.float32)       # (bn, tf) targets

    def accumulate(xv, tv):
        # One exp per element, shared by the stable BCE log-term and the sigmoid.
        e = jnp.exp(-jnp.abs(xv))                                    # EUP
        bce_el = jnp.maximum(xv, 0.0) - xv * tv + jnp.log1p(e)
        recip = pl.reciprocal(1.0 + e, approx=True)                  # EUP, not VALU divide
        sig = jnp.where(xv >= 0.0, recip, e * recip)

        # Per-sample partial sums, resident across the F (k) grid axis.
        bce_ref[...] += jnp.sum(bce_el, axis=-1, keepdims=True)      # (bn, 1)
        inter_ref[...] += jnp.sum(sig * tv, axis=-1, keepdims=True)  # (bn, 1)
        sig_ref[...] += jnp.sum(sig, axis=-1, keepdims=True)         # (bn, 1)
        tgt_ref[...] += jnp.sum(tv, axis=-1, keepdims=True)          # (bn, 1)

    if tail_cols is None:
        # F divides evenly into tiles: no masking anywhere.
        accumulate(x, t)
    else:
        @pl.when(k != last_k)
        def _full_tile():
            accumulate(x, t)

        @pl.when(k == last_k)
        def _ragged_tail():
            lane = jax.lax.broadcasted_iota(jnp.int32, x.shape, 1)
            valid = lane < tail_cols
            accumulate(jnp.where(valid, x, _NEG_PAD), jnp.where(valid, t, 0.0))


def bce_dice_loss(logits, target):
    """NCHW logits/targets -> scalar 0.5*BCE + DiceLoss (matches the PyTorch module)."""
    n = logits.shape[0]
    f = 1
    for d in logits.shape[1:]:
        f *= d

    # Reshape only (free for contiguous arrays): no pad, no wrapper-side cast.
    x = logits.reshape(n, f)
    t = target.reshape(n, f)
    x_bytes = x.dtype.itemsize
    t_bytes = t.dtype.itemsize

    # ---- Batch tiling (bounds VMEM independently of N; parallel axis for v7x). ----
    bn = n if n <= _MAX_BATCH_BLOCK else _MAX_BATCH_BLOCK
    nb = pl.cdiv(n, bn)
    n_pad = nb * bn          # ragged batch tail rows produce garbage partials; sliced off below

    # ---- Feature tiling: byte-budget derived, lane-dense (multiple of 128). ----
    f128 = pl.cdiv(f, 128) * 128
    tf = (_BLOCK_BYTE_BUDGET // (bn * (x_bytes + t_bytes))) // 128 * 128
    tf = max(128, min(f128, tf))
    kf = pl.cdiv(f, tf)
    tail = f - (kf - 1) * tf
    tail_cols = None if tail == tf else tail   # valid lanes in the ragged last tile

    kernel = functools.partial(_bce_dice_kernel, tail_cols=tail_cols)

    acc_shape = jax.ShapeDtypeStruct((n_pad, 1), jnp.float32)
    acc_spec = pl.BlockSpec((bn, 1), lambda i, k: (i, 0))
    in_spec = pl.BlockSpec((bn, tf), lambda i, k: (i, k))

    bce_p, inter_p, sig_p, tgt_p = pl.pallas_call(
        kernel,
        out_shape=(acc_shape, acc_shape, acc_shape, acc_shape),
        grid_spec=pltpu.PrefetchScalarGridSpec(
            num_scalar_prefetch=0,
            grid=(nb, kf),                       # batch axis parallel, F axis reduction
            in_specs=[in_spec, in_spec],
            out_specs=[acc_spec, acc_spec, acc_spec, acc_spec],
        ),
        compiler_params=pltpu.CompilerParams(
            dimension_semantics=("parallel", "arbitrary"),
            vmem_limit_bytes=32 * 1024 * 1024,   # 4 MiB blocks double-buffered fit easily
        ),
        cost_estimate=pl.CostEstimate(
            flops=12 * n * f,
            transcendentals=3 * n * f,
            bytes_accessed=n * f * (x_bytes + t_bytes) + 4 * n_pad * 4,
        ),
    )(x, t)

    # Tiny final combine in plain JAX (avoids any cross-core race on a scalar output).
    bce = jnp.sum(bce_p[:n, 0]) / float(n * f)
    inter_s = inter_p[:n, 0]
    sig_s = sig_p[:n, 0]
    tgt_s = tgt_p[:n, 0]
    dice = (2.0 * inter_s + _SMOOTH) / (sig_s + tgt_s + _SMOOTH)
    dice_loss = 1.0 - jnp.sum(dice) / float(n)
    return 0.5 * bce + dice_loss


def _reference(logits, target):
    # Pure-JAX reference mirroring the PyTorch forward.
    x = logits.astype(jnp.float32)
    t = target.astype(jnp.float32)
    bce_el = jnp.maximum(x, 0.0) - x * t + jnp.log1p(jnp.exp(-jnp.abs(x)))
    bce = jnp.mean(bce_el)
    num = x.shape[0]
    sig = jax.nn.sigmoid(x).reshape(num, -1)
    tt = t.reshape(num, -1)
    inter = sig * tt
    dice = (2.0 * inter.sum(1) + _SMOOTH) / (sig.sum(1) + tt.sum(1) + _SMOOTH)
    dice = 1.0 - dice.sum() / num
    return 0.5 * bce + dice


if __name__ == "__main__":
    key = jax.random.PRNGKey(0)
    k1, k2 = jax.random.split(key)
    # Small shapes consistent with a segmentation head: (batch=2, ch=4, 16, 16)
    logits = jax.random.normal(k1, (2, 4, 16, 16), dtype=jnp.float32)
    target = jax.random.bernoulli(k2, 0.5, (2, 4, 16, 16)).astype(jnp.float32)

    loss = bce_dice_loss(logits, target)
    jax.block_until_ready(loss)

    ref = _reference(logits, target)
    # Tolerance leaves margin for the approx EUP reciprocal used in the sigmoid.
    assert jnp.allclose(loss, ref, rtol=1e-3, atol=1e-3), (loss, ref)
    print("KERNEL_OK")
</pallas_src>

<mosaic_0001>
module attributes {stable_mosaic.version = 11 : i64} {
  func.func @_bce_dice_kernel(%arg0: i32, %arg1: i32, %arg2: memref<2x1024xf32, #tpu.memory_space<vmem>>, %arg3: memref<2x1024xf32, #tpu.memory_space<vmem>>, %arg4: memref<2x1xf32, #tpu.memory_space<vmem>>, %arg5: memref<2x1xf32, #tpu.memory_space<vmem>>, %arg6: memref<2x1xf32, #tpu.memory_space<vmem>>, %arg7: memref<2x1xf32, #tpu.memory_space<vmem>>) attributes {dimension_semantics = [#tpu.dimension_semantics<parallel>, #tpu.dimension_semantics<arbitrary>], iteration_bounds = array<i64: 1, 1>, scalar_prefetch = 0 : i64, scratch_operands = 0 : i64, tpu.core_type = #tpu.core_type<tc>, window_params = [{transform_indices = @transform_0, window_bounds = array<i64: 2, 1024>}, {transform_indices = @transform_1, window_bounds = array<i64: 2, 1024>}, {transform_indices = @transform_2, window_bounds = array<i64: 2, 1>}, {transform_indices = @transform_3, window_bounds = array<i64: 2, 1>}, {transform_indices = @transform_4, window_bounds = array<i64: 2, 1>}, {transform_indices = @transform_5, window_bounds = array<i64: 2, 1>}]} {
    %c0_i32 = arith.constant 0 : i32
    %0 = arith.cmpi eq, %arg1, %c0_i32 : i32
    %1 = arith.extui %0 : i1 to i32
    %c0_i32_0 = arith.constant 0 : i32
    %2 = arith.cmpi ne, %1, %c0_i32_0 : i32
    scf.if %2 {
      %cst_27 = arith.constant 0.000000e+00 : f32
      %43 = vector.broadcast %cst_27 : f32 to vector<2x1xf32>
      %c0_28 = arith.constant 0 : index
      %c0_29 = arith.constant 0 : index
      %44 = vector.load %arg4[%c0_28, %c0_29] : memref<2x1xf32, #tpu.memory_space<vmem>>, vector<2x1xf32>
      tpu.vector_store %arg4[%c0_28, %c0_29], %43 {strides = array<i32>} : memref<2x1xf32, #tpu.memory_space<vmem>>, vector<2x1xf32>,
      %cst_30 = arith.constant 0.000000e+00 : f32
      %45 = vector.broadcast %cst_30 : f32 to vector<2x1xf32>
      %c0_31 = arith.constant 0 : index
      %c0_32 = arith.constant 0 : index
      %46 = vector.load %arg5[%c0_31, %c0_32] : memref<2x1xf32, #tpu.memory_space<vmem>>, vector<2x1xf32>
      tpu.vector_store %arg5[%c0_31, %c0_32], %45 {strides = array<i32>} : memref<2x1xf32, #tpu.memory_space<vmem>>, vector<2x1xf32>,
      %cst_33 = arith.constant 0.000000e+00 : f32
      %47 = vector.broadcast %cst_33 : f32 to vector<2x1xf32>
      %c0_34 = arith.constant 0 : index
      %c0_35 = arith.constant 0 : index
      %48 = vector.load %arg6[%c0_34, %c0_35] : memref<2x1xf32, #tpu.memory_space<vmem>>, vector<2x1xf32>
      tpu.vector_store %arg6[%c0_34, %c0_35], %47 {strides = array<i32>} : memref<2x1xf32, #tpu.memory_space<vmem>>, vector<2x1xf32>,
      %cst_36 = arith.constant 0.000000e+00 : f32
      %49 = vector.broadcast %cst_36 : f32 to vector<2x1xf32>
      %c0_37 = arith.constant 0 : index
      %c0_38 = arith.constant 0 : index
      %50 = vector.load %arg7[%c0_37, %c0_38] : memref<2x1xf32, #tpu.memory_space<vmem>>, vector<2x1xf32>
      tpu.vector_store %arg7[%c0_37, %c0_38], %49 {strides = array<i32>} : memref<2x1xf32, #tpu.memory_space<vmem>>, vector<2x1xf32>,
    } else {
    }
    %c0 = arith.constant 0 : index
    %c0_1 = arith.constant 0 : index
    %3 = vector.load %arg2[%c0, %c0_1] : memref<2x1024xf32, #tpu.memory_space<vmem>>, vector<2x1024xf32>
    %c0_2 = arith.constant 0 : index
    %c0_3 = arith.constant 0 : index
    %4 = vector.load %arg3[%c0_2, %c0_3] : memref<2x1024xf32, #tpu.memory_space<vmem>>, vector<2x1024xf32>
    %5 = math.absf %3 : vector<2x1024xf32>
    %cst = arith.constant 0.000000e+00 : f32
    %6 = vector.broadcast %cst : f32 to vector<2x1024xf32>
    %7 = arith.subf %6, %5 : vector<2x1024xf32>
    %8 = math.exp %7 : vector<2x1024xf32>
    %cst_4 = arith.constant 0.000000e+00 : f32
    %9 = vector.broadcast %cst_4 : f32 to vector<2x1024xf32>
    %10 = arith.maximumf %3, %9 : vector<2x1024xf32>
    %11 = arith.mulf %3, %4 : vector<2x1024xf32>
    %12 = arith.subf %10, %11 : vector<2x1024xf32>
    %13 = math.log1p %8 : vector<2x1024xf32>
    %14 = arith.addf %12, %13 : vector<2x1024xf32>
    %cst_5 = arith.constant 1.000000e+00 : f32
    %15 = vector.broadcast %cst_5 : f32 to vector<2x1024xf32>
    %16 = arith.addf %15, %8 : vector<2x1024xf32>
    %17 = tpu.reciprocal %16 {approx = true} : vector<2x1024xf32> -> vector<2x1024xf32>
    %cst_6 = arith.constant 0.000000e+00 : f32
    %18 = vector.broadcast %cst_6 : f32 to vector<2x1024xf32>
    %19 = arith.cmpf oge, %3, %18 : vector<2x1024xf32>
    %20 = arith.mulf %8, %17 : vector<2x1024xf32>
    %21 = arith.select %19, %17, %20 : vector<2x1024xi1>, vector<2x1024xf32>
    %c0_7 = arith.constant 0 : index
    %c0_8 = arith.constant 0 : index
    %22 = vector.load %arg4[%c0_7, %c0_8] : memref<2x1xf32, #tpu.memory_space<vmem>>, vector<2x1xf32>
    %cst_9 = arith.constant dense<0.000000e+00> : vector<2xf32>
    %23 = vector.multi_reduction <add>, %14, %cst_9 [1] : vector<2x1024xf32> to vector<2xf32>
    %24 = vector.shape_cast %23 : vector<2xf32> to vector<2x1xf32>
    %25 = arith.addf %22, %24 : vector<2x1xf32>
    %c0_10 = arith.constant 0 : index
    %c0_11 = arith.constant 0 : index
    %26 = vector.load %arg4[%c0_10, %c0_11] : memref<2x1xf32, #tpu.memory_space<vmem>>, vector<2x1xf32>
    tpu.vector_store %arg4[%c0_10, %c0_11], %25 {strides = array<i32>} : memref<2x1xf32, #tpu.memory_space<vmem>>, vector<2x1xf32>,
    %c0_12 = arith.constant 0 : index
    %c0_13 = arith.constant 0 : index
    %27 = vector.load %arg5[%c0_12, %c0_13] : memref<2x1xf32, #tpu.memory_space<vmem>>, vector<2x1xf32>
    %28 = arith.mulf %21, %4 : vector<2x1024xf32>
    %cst_14 = arith.constant dense<0.000000e+00> : vector<2xf32>
    %29 = vector.multi_reduction <add>, %28, %cst_14 [1] : vector<2x1024xf32> to vector<2xf32>
    %30 = vector.shape_cast %29 : vector<2xf32> to vector<2x1xf32>
    %31 = arith.addf %27, %30 : vector<2x1xf32>
    %c0_15 = arith.constant 0 : index
    %c0_16 = arith.constant 0 : index
    %32 = vector.load %arg5[%c0_15, %c0_16] : memref<2x1xf32, #tpu.memory_space<vmem>>, vector<2x1xf32>
    tpu.vector_store %arg5[%c0_15, %c0_16], %31 {strides = array<i32>} : memref<2x1xf32, #tpu.memory_space<vmem>>, vector<2x1xf32>,
    %c0_17 = arith.constant 0 : index
    %c0_18 = arith.constant 0 : index
    %33 = vector.load %arg6[%c0_17, %c0_18] : memref<2x1xf32, #tpu.memory_space<vmem>>, vector<2x1xf32>
    %cst_19 = arith.constant dense<0.000000e+00> : vector<2xf32>
    %34 = vector.multi_reduction <add>, %21, %cst_19 [1] : vector<2x1024xf32> to vector<2xf32>
    %35 = vector.shape_cast %34 : vector<2xf32> to vector<2x1xf32>
    %36 = arith.addf %33, %35 : vector<2x1xf32>
    %c0_20 = arith.constant 0 : index
    %c0_21 = arith.constant 0 : index
    %37 = vector.load %arg6[%c0_20, %c0_21] : memref<2x1xf32, #tpu.memory_space<vmem>>, vector<2x1xf32>
    tpu.vector_store %arg6[%c0_20, %c0_21], %36 {strides = array<i32>} : memref<2x1xf32, #tpu.memory_space<vmem>>, vector<2x1xf32>,
    %c0_22 = arith.constant 0 : index
    %c0_23 = arith.constant 0 : index
    %38 = vector.load %arg7[%c0_22, %c0_23] : memref<2x1xf32, #tpu.memory_space<vmem>>, vector<2x1xf32>
    %cst_24 = arith.constant dense<0.000000e+00> : vector<2xf32>
    %39 = vector.multi_reduction <add>, %4, %cst_24 [1] : vector<2x1024xf32> to vector<2xf32>
    %40 = vector.shape_cast %39 : vector<2xf32> to vector<2x1xf32>
    %41 = arith.addf %38, %40 : vector<2x1xf32>
    %c0_25 = arith.constant 0 : index
    %c0_26 = arith.constant 0 : index
    %42 = vector.load %arg7[%c0_25, %c0_26] : memref<2x1xf32, #tpu.memory_space<vmem>>, vector<2x1xf32>
    tpu.vector_store %arg7[%c0_25, %c0_26], %41 {strides = array<i32>} : memref<2x1xf32, #tpu.memory_space<vmem>>, vector<2x1xf32>,
    return
  }
  func.func @transform_0(%arg0: i32, %arg1: i32) -> (i32, i32) {
    %c0_i32 = arith.constant 0 : i32
    return %arg0, %arg1 : i32, i32
  }
  func.func @transform_1(%arg0: i32, %arg1: i32) -> (i32, i32) {
    %c0_i32 = arith.constant 0 : i32
    return %arg0, %arg1 : i32, i32
  }
  func.func @transform_2(%arg0: i32, %arg1: i32) -> (i32, i32) {
    %c0_i32 = arith.constant 0 : i32
    %c0_i32_0 = arith.constant 0 : i32
    return %arg0, %c0_i32 : i32, i32
  }
  func.func @transform_3(%arg0: i32, %arg1: i32) -> (i32, i32) {
    %c0_i32 = arith.constant 0 : i32
    %c0_i32_0 = arith.constant 0 : i32
    return %arg0, %c0_i32 : i32, i32
  }
  func.func @transform_4(%arg0: i32, %arg1: i32) -> (i32, i32) {
    %c0_i32 = arith.constant 0 : i32
    %c0_i32_0 = arith.constant 0 : i32
    return %arg0, %c0_i32 : i32, i32
  }
  func.func @transform_5(%arg0: i32, %arg1: i32) -> (i32, i32) {
    %c0_i32 = arith.constant 0 : i32
    %c0_i32_0 = arith.constant 0 : i32
    return %arg0, %c0_i32 : i32, i32
  }
}

</mosaic_0001>

<llo_original>
// kernel: tpu_custom_call.1
$region0: #{tpu_custom_call.1}
  #allocation0 [shape = 'u32[]', space=smem, size = 0x4, offset = 0x4, fixed_abs, tag = 'smem constant byte address 0x4 - core index']
  #allocation1 [shape = 'u32[144,128]{1,0:T(1,128)}', space=vmem, size = 0x12000, scoped, tag = 'internal scratch']
  %s0 = inlined_call_operand.hbm [shape: f32[2,1024], index: 0, kind: input, shape index: {}]
  %s1 = inlined_call_operand.hbm [shape: f32[2,1024], index: 1, kind: input, shape index: {}]
  %s2 = inlined_call_operand.vmem [shape: f32[2,1], index: 2, kind: output, shape index: {0}]
  %s3 = inlined_call_operand.vmem [shape: f32[2,1], index: 3, kind: output, shape index: {1}]
  %s4 = inlined_call_operand.vmem [shape: f32[2,1], index: 4, kind: output, shape index: {2}]
  %s5 = inlined_call_operand.vmem [shape: f32[2,1], index: 5, kind: output, shape index: {3}]
  %6 = xla_tuple %s2, %s3, %s4, %s5
  %s7 = sld [smem:[#allocation0]]
  $region54: #{tpu_custom_call.1} parent=0
    _
  %s9 = ssub.s32 1, %s7
  %s10 = scalar_select 0, %s9, %s7
  $region1: #{tpu_custom_call.1} parent=0
    #allocation2 [shape = 'u8[8192]{0}', space=vmem, size = 0x2000, scoped, tag = 'input window, operand 0, single buffered']
    #allocation3 [shape = 's32[1]{0}', space=sflag, size = 0x4, scoped, tag = 'scoped memory for tpu_custom_call.1']
    #allocation4 [shape = 'u8[8192]{0}', space=vmem, size = 0x2000, scoped, tag = 'input window, operand 1, single buffered']
    #allocation5 [shape = 's32[1]{0}', space=sflag, size = 0x4, scoped, tag = 'scoped memory for tpu_custom_call.1']
    %11 = vsyncpa [#allocation3], 0
    %12 = vsyncpa [#allocation5], 0
    // Predicated region
    $region2: #{tpu_custom_call.1} parent=1 // pred_check
      _
    $region3: #{tpu_custom_call.1} parent=1 // pred_check_branch
      %14 = sbr.rel (0) target = $region5
    $region4: #{tpu_custom_call.1} parent=1 // pred_region
      %s16 = ssub.s32 256, 256
      %17 = vsyncadd [#allocation3], %s16
      %s19 = sshll.u32 [#allocation2], 4
      %s20 = int_to_ptr.vmem [resolvable:$true] %s19
      %22 = dma.hbm_to_vmem [thread:$0]  %s0, 256, %s20, [#allocation3]
    $region5: #{tpu_custom_call.1} parent=1 // pred_fallthru
      _
    // Predicated region
    $region6: #{tpu_custom_call.1} parent=1 // pred_check
      _
    $region7: #{tpu_custom_call.1} parent=1 // pred_check_branch
      %24 = sbr.rel (0) target = $region9
    $region8: #{tpu_custom_call.1} parent=1 // pred_region
      %s26 = ssub.s32 256, 256
      %27 = vsyncadd [#allocation5], %s26
      %s29 = sshll.u32 [#allocation4], 4
      %s30 = int_to_ptr.vmem [resolvable:$true] %s29
      %32 = dma.hbm_to_vmem [thread:$0]  %s1, 256, %s30, [#allocation5]
    $region9: #{tpu_custom_call.1} parent=1 // pred_fallthru
      _
    // Predicated region
    $region10: #{tpu_custom_call.1} parent=1 // pred_check
      _
    $region11: #{tpu_custom_call.1} parent=1 // pred_check_branch
      %34 = sbr.rel (0) target = $region13
    $region12: #{tpu_custom_call.1} parent=1 // pred_region
      %35 = dma.done [#allocation3], 256
    $region13: #{tpu_custom_call.1} parent=1 // pred_fallthru
      _
    // Predicated region
    $region14: #{tpu_custom_call.1} parent=1 // pred_check
      _
    $region15: #{tpu_custom_call.1} parent=1 // pred_check_branch
      %37 = sbr.rel (0) target = $region17
    $region16: #{tpu_custom_call.1} parent=1 // pred_region
      %38 = dma.done [#allocation5], 256
    $region17: #{tpu_custom_call.1} parent=1 // pred_fallthru
      _
    %p39 = scmp.eq.s32.totalorder 0, 0
    // Predicated region
    $region18: #{tpu_custom_call.1} parent=1 // pred_check
      %p40 = pneg %p39
    $region19: #{tpu_custom_call.1} parent=1 // pred_check_branch
      %42 = sbr.rel (%p40) target = $region21
    $region20: #{tpu_custom_call.1} parent=1 // pred_region
      %vm43 = vcmask 1024
      %44 = vst.msk [vmem:[%s2] sm:$0x3] %vm43, 0.0
      %45 = vst.msk [vmem:[%s3] sm:$0x3] %vm43, 0.0
      %46 = vst.msk [vmem:[%s4] sm:$0x3] %vm43, 0.0
      %47 = vst.msk [vmem:[%s5] sm:$0x3] %vm43, 0.0
    $region21: #{tpu_custom_call.1} parent=1 // pred_fallthru
      _
    %v48 = vld [vmem:[#allocation2] sm:$0xff]
    %v49 = vld [vmem:[#allocation2 + $0x8] sm:$0xff]
    %v50 = vld [vmem:[#allocation4] sm:$0xff]
    %v51 = vld [vmem:[#allocation4 + $0x8] sm:$0xff]
    %v52 = vand.u32 2147483647, %v48
    %v53 = vand.u32 2147483647, %v49
    %v54 = vsub.f32 0.0, %v52
    %v55 = vsub.f32 0.0, %v53
    %v56 = vmul.f32 %v54, 1.442695
    %v57 = vpow.pop %v56
    %v58 = vmul.f32 %v55, 1.442695
    %v59 = vpow.pop %v58
    %v60 = vmax.f32 %v48, 0.0
    %v61 = vmax.f32 %v49, 0.0
    %v62 = vmul.f32 %v48, %v50
    %v63 = vmul.f32 %v49, %v51
    %v64 = vsub.f32 %v60, %v62
    %v65 = vsub.f32 %v61, %v63
    %v66 = vadd.f32 %v57, 1.0
    %v67 = vlog2.pop %v66
    %v68 = vmul.f32 %v67, 0.6931472
    %v69 = vmul.f32 -0.5, %v57
    %v70 = vadd.f32 %v69, 1.0
    %v71 = vmul.f32 %v70, %v57
    %v72 = vand.u32 2147483647, %v57
    %vm73 = vcmp.lt.f32.partialorder %v72, 0.0004427343
    %v74 = vsel %vm73, %v71, %v68
    %v75 = vadd.f32 %v59, 1.0
    %v76 = vlog2.pop %v75
    %v77 = vmul.f32 %v76, 0.6931472
    %v78 = vmul.f32 -0.5, %v59
    %v79 = vadd.f32 %v78, 1.0
    %v80 = vmul.f32 %v79, %v59
    %v81 = vand.u32 2147483647, %v59
    %vm82 = vcmp.lt.f32.partialorder %v81, 0.0004427343
    %v83 = vsel %vm82, %v80, %v77
    %v84 = vadd.f32 %v64, %v74
    %v85 = vadd.f32 %v65, %v83
    %v86 = vadd.f32 %v57, 1.0
    %v87 = vadd.f32 %v59, 1.0
    %v88 = vrcp.pop %v86
    %v89 = vrcp.pop %v87
    %vm90 = vcmp.ge.f32.partialorder %v48, 0.0
    %vm91 = vcmp.ge.f32.partialorder %v49, 0.0
    %v92 = vmul.f32 %v57, %v88
    %v93 = vmul.f32 %v59, %v89
    %v94 = vsel %vm90, %v88, %v92
    %v95 = vsel %vm91, %v89, %v93
    %v96 = vld [vmem:[%s2] sm:$0x3]
    %v99 = vcombine.high %v84, %v84
    %v101 = vunpack.c.l.s4 1983009808
    %v102 = vunpack.c.0.s8 %v101
    %v103 = vlaneseq
    %v104 = vshrl.u32 %v103, 7
    %v105 = vsub.s32 %v102, %v104
    %v106 = vrot.slane %v84, %v105
    %v108 = vunpack.c.l.s4 1983009808
    %v109 = vunpack.c.0.s8 %v108
    %v110 = vlaneseq
    %v111 = vshrl.u32 %v110, 7
    %v112 = vsub.s32 %v109, %v111
    %v113 = vrot.slane %v99, %v112
    %v114 = vcombine.high %v106, %v106
    %v115 = vcombine.high %v113, %v113
    %v116 = vcombine.high %v85, %v85
    %v118 = vunpack.c.l.s4 1983009808
    %v119 = vunpack.c.0.s8 %v118
    %v120 = vlaneseq
    %v121 = vshrl.u32 %v120, 7
    %v122 = vsub.s32 %v119, %v121
    %v123 = vrot.slane %v85, %v122
    %v125 = vunpack.c.l.s4 1983009808
    %v126 = vunpack.c.0.s8 %v125
    %v127 = vlaneseq
    %v128 = vshrl.u32 %v127, 7
    %v129 = vsub.s32 %v126, %v128
    %v130 = vrot.slane %v116, %v129
    %v131 = vcombine.high %v123, %v123
    %v132 = vcombine.high %v130, %v130
    %vm141 = vcmask 1041408
    %v142 = vsel %vm141, %v106, 0.0
    %v143 = vsel %vm141, %v114, 0.0
    %v144 = vadd.f32 %v142, %v143
    %v145 = vsel %vm141, %v113, 0.0
    %v146 = vadd.f32 %v144, %v145
    %v147 = vsel %vm141, %v115, 0.0
    %v148 = vadd.f32 %v146, %v147
    %v149 = vsel %vm141, %v123, 0.0
    %v150 = vadd.f32 %v148, %v149
    %v151 = vsel %vm141, %v131, 0.0
    %v152 = vadd.f32 %v150, %v151
    %v153 = vsel %vm141, %v130, 0.0
    %v154 = vadd.f32 %v152, %v153
    %v155 = vsel %vm141, %v132, 0.0
    %v156 = vadd.f32 %v154, %v155
    %157 = vadd.xlane.f32.xlu0 %v156
    %v158 = vpop.xlane.xlu0 %157
    %v159 = vadd.f32 %v96, %v158
    %vm160 = vcmask 1024
    %161 = vst.msk [vmem:[%s2] sm:$0x3] %vm160, %v159
    %v162 = vld [vmem:[%s3] sm:$0x3]
    %v163 = vmul.f32 %v94, %v50
    %v164 = vmul.f32 %v95, %v51
    %v167 = vcombine.high %v163, %v163
    %v169 = vunpack.c.l.s4 1983009808
    %v170 = vunpack.c.0.s8 %v169
    %v171 = vlaneseq
    %v172 = vshrl.u32 %v171, 7
    %v173 = vsub.s32 %v170, %v172
    %v174 = vrot.slane %v163, %v173
    %v176 = vunpack.c.l.s4 1983009808
    %v177 = vunpack.c.0.s8 %v176
    %v178 = vlaneseq
    %v179 = vshrl.u32 %v178, 7
    %v180 = vsub.s32 %v177, %v179
    %v181 = vrot.slane %v167, %v180
    %v182 = vcombine.high %v174, %v174
    %v183 = vcombine.high %v181, %v181
    %v184 = vcombine.high %v164, %v164
    %v186 = vunpack.c.l.s4 1983009808
    %v187 = vunpack.c.0.s8 %v186
    %v188 = vlaneseq
    %v189 = vshrl.u32 %v188, 7
    %v190 = vsub.s32 %v187, %v189
    %v191 = vrot.slane %v164, %v190
    %v193 = vunpack.c.l.s4 1983009808
    %v194 = vunpack.c.0.s8 %v193
    %v195 = vlaneseq
    %v196 = vshrl.u32 %v195, 7
    %v197 = vsub.s32 %v194, %v196
    %v198 = vrot.slane %v184, %v197
    %v199 = vcombine.high %v191, %v191
    %v200 = vcombine.high %v198, %v198
    %v209 = vsel %vm141, %v174, 0.0
    %v210 = vsel %vm141, %v182, 0.0
    %v211 = vadd.f32 %v209, %v210
    %v212 = vsel %vm141, %v181, 0.0
    %v213 = vadd.f32 %v211, %v212
    %v214 = vsel %vm141, %v183, 0.0
    %v215 = vadd.f32 %v213, %v214
    %v216 = vsel %vm141, %v191, 0.0
    %v217 = vadd.f32 %v215, %v216
    %v218 = vsel %vm141, %v199, 0.0
    %v219 = vadd.f32 %v217, %v218
    %v220 = vsel %vm141, %v198, 0.0
    %v221 = vadd.f32 %v219, %v220
    %v222 = vsel %vm141, %v200, 0.0
    %v223 = vadd.f32 %v221, %v222
    %224 = vadd.xlane.f32.xlu0 %v223
    %v225 = vpop.xlane.xlu0 %224
    %v226 = vadd.f32 %v162, %v225
    %227 = vst.msk [vmem:[%s3] sm:$0x3] %vm160, %v226
    %v228 = vld [vmem:[%s4] sm:$0x3]
    %v231 = vcombine.high %v94, %v94
    %v233 = vunpack.c.l.s4 1983009808
    %v234 = vunpack.c.0.s8 %v233
    %v235 = vlaneseq
    %v236 = vshrl.u32 %v235, 7
    %v237 = vsub.s32 %v234, %v236
    %v238 = vrot.slane %v94, %v237
    %v240 = vunpack.c.l.s4 1983009808
    %v241 = vunpack.c.0.s8 %v240
    %v242 = vlaneseq
    %v243 = vshrl.u32 %v242, 7
    %v244 = vsub.s32 %v241, %v243
    %v245 = vrot.slane %v231, %v244
    %v246 = vcombine.high %v238, %v238
    %v247 = vcombine.high %v245, %v245
    %v248 = vcombine.high %v95, %v95
    %v250 = vunpack.c.l.s4 1983009808
    %v251 = vunpack.c.0.s8 %v250
    %v252 = vlaneseq
    %v253 = vshrl.u32 %v252, 7
    %v254 = vsub.s32 %v251, %v253
    %v255 = vrot.slane %v95, %v254
    %v257 = vunpack.c.l.s4 1983009808
    %v258 = vunpack.c.0.s8 %v257
    %v259 = vlaneseq
    %v260 = vshrl.u32 %v259, 7
    %v261 = vsub.s32 %v258, %v260
    %v262 = vrot.slane %v248, %v261
    %v263 = vcombine.high %v255, %v255
    %v264 = vcombine.high %v262, %v262
    %v273 = vsel %vm141, %v238, 0.0
    %v274 = vsel %vm141, %v246, 0.0
    %v275 = vadd.f32 %v273, %v274
    %v276 = vsel %vm141, %v245, 0.0
    %v277 = vadd.f32 %v275, %v276
    %v278 = vsel %vm141, %v247, 0.0
    %v279 = vadd.f32 %v277, %v278
    %v280 = vsel %vm141, %v255, 0.0
    %v281 = vadd.f32 %v279, %v280
    %v282 = vsel %vm141, %v263, 0.0
    %v283 = vadd.f32 %v281, %v282
    %v284 = vsel %vm141, %v262, 0.0
    %v285 = vadd.f32 %v283, %v284
    %v286 = vsel %vm141, %v264, 0.0
    %v287 = vadd.f32 %v285, %v286
    %288 = vadd.xlane.f32.xlu0 %v287
    %v289 = vpop.xlane.xlu0 %288
    %v290 = vadd.f32 %v228, %v289
    %291 = vst.msk [vmem:[%s4] sm:$0x3] %vm160, %v290
    %v292 = vld [vmem:[%s5] sm:$0x3]
    %v295 = vcombine.high %v50, %v50
    %v297 = vunpack.c.l.s4 1983009808
    %v298 = vunpack.c.0.s8 %v297
    %v299 = vlaneseq
    %v300 = vshrl.u32 %v299, 7
    %v301 = vsub.s32 %v298, %v300
    %v302 = vrot.slane %v50, %v301
    %v304 = vunpack.c.l.s4 1983009808
    %v305 = vunpack.c.0.s8 %v304
    %v306 = vlaneseq
    %v307 = vshrl.u32 %v306, 7
    %v308 = vsub.s32 %v305, %v307
    %v309 = vrot.slane %v295, %v308
    %v310 = vcombine.high %v302, %v302
    %v311 = vcombine.high %v309, %v309
    %v312 = vcombine.high %v51, %v51
    %v314 = vunpack.c.l.s4 1983009808
    %v315 = vunpack.c.0.s8 %v314
    %v316 = vlaneseq
    %v317 = vshrl.u32 %v316, 7
    %v318 = vsub.s32 %v315, %v317
    %v319 = vrot.slane %v51, %v318
    %v321 = vunpack.c.l.s4 1983009808
    %v322 = vunpack.c.0.s8 %v321
    %v323 = vlaneseq
    %v324 = vshrl.u32 %v323, 7
    %v325 = vsub.s32 %v322, %v324
    %v326 = vrot.slane %v312, %v325
    %v327 = vcombine.high %v319, %v319
    %v328 = vcombine.high %v326, %v326
    %v337 = vsel %vm141, %v302, 0.0
    %v338 = vsel %vm141, %v310, 0.0
    %v339 = vadd.f32 %v337, %v338
    %v340 = vsel %vm141, %v309, 0.0
    %v341 = vadd.f32 %v339, %v340
    %v342 = vsel %vm141, %v311, 0.0
    %v343 = vadd.f32 %v341, %v342
    %v344 = vsel %vm141, %v319, 0.0
    %v345 = vadd.f32 %v343, %v344
    %v346 = vsel %vm141, %v327, 0.0
    %v347 = vadd.f32 %v345, %v346
    %v348 = vsel %vm141, %v326, 0.0
    %v349 = vadd.f32 %v347, %v348
    %v350 = vsel %vm141, %v328, 0.0
    %v351 = vadd.f32 %v349, %v350
    %352 = vadd.xlane.f32.xlu0 %v351
    %v353 = vpop.xlane.xlu0 %352
    %v354 = vadd.f32 %v292, %v353
    %355 = vst.msk [vmem:[%s5] sm:$0x3] %vm160, %v354
    // Predicated region
    $region22: #{tpu_custom_call.1} parent=1 // pred_check
      _
    $region23: #{tpu_custom_call.1} parent=1 // pred_check_branch
      %357 = sbr.rel (0) target = $region25
    $region24: #{tpu_custom_call.1} parent=1 // pred_region
      _
    $region25: #{tpu_custom_call.1} parent=1 // pred_fallthru
      _
    // Predicated region
    $region26: #{tpu_custom_call.1} parent=1 // pred_check
      _
    $region27: #{tpu_custom_call.1} parent=1 // pred_check_branch
      %359 = sbr.rel (0) target = $region29
    $region28: #{tpu_custom_call.1} parent=1 // pred_region
      _
    $region29: #{tpu_custom_call.1} parent=1 // pred_fallthru
      _
    // Predicated region
    $region30: #{tpu_custom_call.1} parent=1 // pred_check
      _
    $region31: #{tpu_custom_call.1} parent=1 // pred_check_branch
      %361 = sbr.rel (0) target = $region33
    $region32: #{tpu_custom_call.1} parent=1 // pred_region
      _
    $region33: #{tpu_custom_call.1} parent=1 // pred_fallthru
      _
    // Predicated region
    $region34: #{tpu_custom_call.1} parent=1 // pred_check
      _
    $region35: #{tpu_custom_call.1} parent=1 // pred_check_branch
      %363 = sbr.rel (0) target = $region37
    $region36: #{tpu_custom_call.1} parent=1 // pred_region
      _
    $region37: #{tpu_custom_call.1} parent=1 // pred_fallthru
      _
    // Predicated region
    $region38: #{tpu_custom_call.1} parent=1 // pred_check
      _
    $region39: #{tpu_custom_call.1} parent=1 // pred_check_branch
      %365 = sbr.rel (0) target = $region41
    $region40: #{tpu_custom_call.1} parent=1 // pred_region
      _
    $region41: #{tpu_custom_call.1} parent=1 // pred_fallthru
      _
    // Predicated region
    $region42: #{tpu_custom_call.1} parent=1 // pred_check
      _
    $region43: #{tpu_custom_call.1} parent=1 // pred_check_branch
      %367 = sbr.rel (0) target = $region45
    $region44: #{tpu_custom_call.1} parent=1 // pred_region
      _
    $region45: #{tpu_custom_call.1} parent=1 // pred_fallthru
      _
    // Predicated region
    $region46: #{tpu_custom_call.1} parent=1 // pred_check
      _
    $region47: #{tpu_custom_call.1} parent=1 // pred_check_branch
      %369 = sbr.rel (0) target = $region49
    $region48: #{tpu_custom_call.1} parent=1 // pred_region
      _
    $region49: #{tpu_custom_call.1} parent=1 // pred_fallthru
      _
    // Predicated region
    $region50: #{tpu_custom_call.1} parent=1 // pred_check
      _
    $region51: #{tpu_custom_call.1} parent=1 // pred_check_branch
      %371 = sbr.rel (0) target = $region53
    $region52: #{tpu_custom_call.1} parent=1 // pred_region
      _
    $region53: #{tpu_custom_call.1} parent=1 // pred_fallthru
      _
    %372 = vsyncpa [#allocation3], 1
    %373 = vsyncpa [#allocation5], 1

</llo_original>
